<compile_context>
chip_gen: v5e
topology: v5e:2x2
jax: 0.10.0
libtpu: 0.0.40
codegen_flags: <defaults>
</compile_context>

<pallas_src>
import math
import functools

import jax
import jax.numpy as jnp
from jax import lax
from jax.experimental import pallas as pl
from jax.experimental.pallas import tpu as pltpu

F32 = jnp.float32
BF16 = jnp.bfloat16
VMEM_LIMIT = 56 * 1024 * 1024


# --------------------------------------------------------------------------
# small helpers
# --------------------------------------------------------------------------

def _pad_axis(x, axis, mult):
    size = x.shape[axis]
    pad = (-size) % mult
    if pad == 0:
        return x
    widths = [(0, 0)] * x.ndim
    widths[axis] = (0, pad)
    return jnp.pad(x, widths)


def _ln(x, g, b):
    mu = jnp.mean(x, axis=-1, keepdims=True)
    var = jnp.mean(jnp.square(x - mu), axis=-1, keepdims=True)
    return (x - mu) * lax.rsqrt(var + 1e-5) * g + b


# --------------------------------------------------------------------------
# tiled linear (optionally + residual), bf16 MXU inputs, f32 accumulation
# --------------------------------------------------------------------------

def _matmul_kernel(x_ref, w_ref, b_ref, o_ref, acc_ref):
    k = pl.program_id(2)

    @pl.when(k == 0)
    def _():
        acc_ref[...] = jnp.zeros_like(acc_ref)

    acc_ref[...] += jnp.dot(x_ref[...], w_ref[...],
                            preferred_element_type=jnp.float32)

    @pl.when(k == pl.num_programs(2) - 1)
    def _():
        o_ref[...] = (acc_ref[...] + b_ref[...]).astype(o_ref.dtype)


def _matmul_res_kernel(x_ref, w_ref, b_ref, r_ref, o_ref, acc_ref):
    k = pl.program_id(2)

    @pl.when(k == 0)
    def _():
        acc_ref[...] = jnp.zeros_like(acc_ref)

    acc_ref[...] += jnp.dot(x_ref[...], w_ref[...],
                            preferred_element_type=jnp.float32)

    @pl.when(k == pl.num_programs(2) - 1)
    def _():
        o_ref[...] = (acc_ref[...] + b_ref[...]
                      + r_ref[...].astype(jnp.float32)).astype(o_ref.dtype)


def linear(x, w, b, residual=None, out_dtype=F32, tm=256, tn=256, tk=512):
    """y = x @ w + b (+ residual).  x:[M,K] w:[K,N] -> [M,N]."""
    M, K = x.shape
    N = w.shape[1]
    tm, tn, tk = min(tm, M), min(tn, N), min(tk, K)

    xp = _pad_axis(_pad_axis(x, 0, tm), 1, tk).astype(BF16)
    wp = _pad_axis(_pad_axis(w.astype(BF16), 0, tk), 1, tn)
    bp = _pad_axis(b.reshape(1, N).astype(F32), 1, tn)
    Mp, Kp = xp.shape
    Np = wp.shape[1]
    grid = (Mp // tm, Np // tn, Kp // tk)

    in_specs = [pl.BlockSpec((tm, tk), lambda i, j, k: (i, k)),
                pl.BlockSpec((tk, tn), lambda i, j, k: (k, j)),
                pl.BlockSpec((1, tn), lambda i, j, k: (0, j))]
    args = [xp, wp, bp]
    if residual is None:
        kernel = _matmul_kernel
    else:
        kernel = _matmul_res_kernel
        rp = _pad_axis(_pad_axis(residual.astype(F32), 0, tm), 1, tn)
        in_specs.append(pl.BlockSpec((tm, tn), lambda i, j, k: (i, j)))
        args.append(rp)

    out = pl.pallas_call(
        kernel,
        grid=grid,
        out_shape=jax.ShapeDtypeStruct((Mp, Np), out_dtype),
        in_specs=in_specs,
        out_specs=pl.BlockSpec((tm, tn), lambda i, j, k: (i, j)),
        scratch_shapes=[pltpu.VMEM((tm, tn), F32)],
        compiler_params=pltpu.CompilerParams(
            dimension_semantics=("parallel", "parallel", "arbitrary")),
    )(*args)
    return out[:M, :N]


# --------------------------------------------------------------------------
# fused LayerNorm -> matmul (+bias), LN cached across N tiles
# --------------------------------------------------------------------------

def _ln_matmul_kernel(x_ref, g_ref, bg_ref, w_ref, b_ref, o_ref, xn_scr):
    @pl.when(pl.program_id(1) == 0)
    def _():
        xn_scr[...] = _ln(x_ref[...].astype(jnp.float32),
                          g_ref[...], bg_ref[...]).astype(BF16)

    o_ref[...] = (jnp.dot(xn_scr[...], w_ref[...],
                          preferred_element_type=jnp.float32)
                  + b_ref[...]).astype(o_ref.dtype)


def ln_linear(x, g, b_ln, w, b, out_dtype=F32, tm=256, tn=512):
    M, D = x.shape
    N = w.shape[1]
    tm, tn = min(tm, M), min(tn, N)
    xp = _pad_axis(x.astype(F32), 0, tm)
    wp = _pad_axis(w.astype(BF16), 1, tn)
    bp = _pad_axis(b.reshape(1, N).astype(F32), 1, tn)
    Mp = xp.shape[0]
    Np = wp.shape[1]
    out = pl.pallas_call(
        _ln_matmul_kernel,
        grid=(Mp // tm, Np // tn),
        out_shape=jax.ShapeDtypeStruct((Mp, Np), out_dtype),
        in_specs=[pl.BlockSpec((tm, D), lambda i, j: (i, 0)),
                  pl.BlockSpec((1, D), lambda i, j: (0, 0)),
                  pl.BlockSpec((1, D), lambda i, j: (0, 0)),
                  pl.BlockSpec((D, tn), lambda i, j: (0, j)),
                  pl.BlockSpec((1, tn), lambda i, j: (0, j))],
        out_specs=pl.BlockSpec((tm, tn), lambda i, j: (i, j)),
        scratch_shapes=[pltpu.VMEM((tm, D), BF16)],
        compiler_params=pltpu.CompilerParams(
            dimension_semantics=("parallel", "arbitrary")),
    )(xp, g.reshape(1, D).astype(F32), b_ln.reshape(1, D).astype(F32), wp, bp)
    return out[:M, :N]


# --------------------------------------------------------------------------
# standalone tiled LayerNorm (encoder final norm only)
# --------------------------------------------------------------------------

def _layernorm_kernel(x_ref, g_ref, b_ref, o_ref):
    o_ref[...] = _ln(x_ref[...].astype(jnp.float32),
                     g_ref[...], b_ref[...]).astype(o_ref.dtype)


def layer_norm(x, g, b, out_dtype=F32, tm=256):
    M, D = x.shape
    tm = min(tm, M)
    xp = _pad_axis(x.astype(F32), 0, tm)
    Mp = xp.shape[0]
    out = pl.pallas_call(
        _layernorm_kernel,
        grid=(Mp // tm,),
        out_shape=jax.ShapeDtypeStruct((Mp, D), out_dtype),
        in_specs=[pl.BlockSpec((tm, D), lambda i: (i, 0)),
                  pl.BlockSpec((1, D), lambda i: (0, 0)),
                  pl.BlockSpec((1, D), lambda i: (0, 0))],
        out_specs=pl.BlockSpec((tm, D), lambda i: (i, 0)),
        compiler_params=pltpu.CompilerParams(
            dimension_semantics=("parallel",)),
    )(xp, g.reshape(1, D).astype(F32), b.reshape(1, D).astype(F32))
    return out[:M]


# --------------------------------------------------------------------------
# fused LN -> FFN (Linear, GELU, Linear) -> + residual, hidden axis tiled
# --------------------------------------------------------------------------

def _ln_ffn_res_kernel(x_ref, g_ref, bg_ref, w1_ref, b1_ref, w2_ref, b2_ref,
                       o_ref, xn_scr, acc_scr):
    hb = pl.program_id(1)

    @pl.when(hb == 0)
    def _():
        xn_scr[...] = _ln(x_ref[...].astype(jnp.float32),
                          g_ref[...], bg_ref[...]).astype(BF16)
        acc_scr[...] = jnp.zeros_like(acc_scr)

    h = jnp.dot(xn_scr[...], w1_ref[...],
                preferred_element_type=jnp.float32) + b1_ref[...]
    h = jax.nn.gelu(h, approximate=False)
    acc_scr[...] += jnp.dot(h.astype(BF16), w2_ref[...],
                            preferred_element_type=jnp.float32)

    @pl.when(hb == pl.num_programs(1) - 1)
    def _():
        o_ref[...] = (x_ref[...].astype(jnp.float32) + acc_scr[...]
                      + b2_ref[...]).astype(o_ref.dtype)


def ln_ffn_residual(x, g, b, w1, b1, w2, b2, tm=256, th=512):
    M, D = x.shape
    H = w1.shape[1]
    tm, th = min(tm, M), min(th, H)
    xp = _pad_axis(x.astype(F32), 0, tm)
    w1p = _pad_axis(w1.astype(BF16), 1, th)
    b1p = _pad_axis(b1.reshape(1, H).astype(F32), 1, th)
    w2p = _pad_axis(w2.astype(BF16), 0, th)
    Mp = xp.shape[0]
    Hp = w1p.shape[1]
    out = pl.pallas_call(
        _ln_ffn_res_kernel,
        grid=(Mp // tm, Hp // th),
        out_shape=jax.ShapeDtypeStruct((Mp, D), F32),
        in_specs=[pl.BlockSpec((tm, D), lambda i, h: (i, 0)),
                  pl.BlockSpec((1, D), lambda i, h: (0, 0)),
                  pl.BlockSpec((1, D), lambda i, h: (0, 0)),
                  pl.BlockSpec((D, th), lambda i, h: (0, h)),
                  pl.BlockSpec((1, th), lambda i, h: (0, h)),
                  pl.BlockSpec((th, D), lambda i, h: (h, 0)),
                  pl.BlockSpec((1, D), lambda i, h: (0, 0))],
        out_specs=pl.BlockSpec((tm, D), lambda i, h: (i, 0)),
        scratch_shapes=[pltpu.VMEM((tm, D), BF16), pltpu.VMEM((tm, D), F32)],
        compiler_params=pltpu.CompilerParams(
            dimension_semantics=("parallel", "arbitrary"),
            vmem_limit_bytes=VMEM_LIMIT),
    )(xp, g.reshape(1, D).astype(F32), b.reshape(1, D).astype(F32),
      w1p, b1p, w2p, b2.reshape(1, D).astype(F32))
    return out[:M]


# --------------------------------------------------------------------------
# fused LN -> experts -> gated sum -> + residual  (MoE block, expert axis
# tiled: only one expert's weights resident per grid step)
# --------------------------------------------------------------------------

def _ln_moe_res_kernel(x_ref, g_ref, bg_ref, gate_ref, w1_ref, b1_ref,
                       w2_ref, b2_ref, o_ref, xn_scr, acc_scr):
    e = pl.program_id(1)

    @pl.when(e == 0)
    def _():
        xn_scr[...] = _ln(x_ref[...].astype(jnp.float32),
                          g_ref[...], bg_ref[...]).astype(BF16)
        acc_scr[...] = jnp.zeros_like(acc_scr)

    h = jnp.dot(xn_scr[...], w1_ref[0],
                preferred_element_type=jnp.float32) + b1_ref[0]
    h = jax.nn.gelu(h, approximate=False)
    y = jnp.dot(h.astype(BF16), w2_ref[0],
                preferred_element_type=jnp.float32) + b2_ref[0]

    gates = gate_ref[...].astype(jnp.float32)                    # [tm, E]
    lane = lax.broadcasted_iota(jnp.int32, gates.shape, 1)
    gate_e = jnp.sum(jnp.where(lane == e, gates, 0.0),
                     axis=-1, keepdims=True)                     # [tm, 1]
    acc_scr[...] += gate_e * y

    @pl.when(e == pl.num_programs(1) - 1)
    def _():
        o_ref[...] = (x_ref[...].astype(jnp.float32)
                      + acc_scr[...]).astype(o_ref.dtype)


def ln_moe_residual(x, g, b, gates, w1, b1, w2, b2, tm=256):
    M, D = x.shape
    E, D_in, H = w1.shape
    assert D_in == D and b1.shape == (E, 1, H) and b2.shape == (E, 1, D)
    tm = min(tm, M)
    xp = _pad_axis(x.astype(F32), 0, tm)
    gp = _pad_axis(gates.astype(F32), 0, tm)
    Mp = xp.shape[0]
    out = pl.pallas_call(
        _ln_moe_res_kernel,
        grid=(Mp // tm, E),
        out_shape=jax.ShapeDtypeStruct((Mp, D), F32),
        in_specs=[pl.BlockSpec((tm, D), lambda i, e: (i, 0)),
                  pl.BlockSpec((1, D), lambda i, e: (0, 0)),
                  pl.BlockSpec((1, D), lambda i, e: (0, 0)),
                  pl.BlockSpec((tm, E), lambda i, e: (i, 0)),
                  pl.BlockSpec((1, D, H), lambda i, e: (e, 0, 0)),
                  pl.BlockSpec((1, 1, H), lambda i, e: (e, 0, 0)),
                  pl.BlockSpec((1, H, D), lambda i, e: (e, 0, 0)),
                  pl.BlockSpec((1, 1, D), lambda i, e: (e, 0, 0))],
        out_specs=pl.BlockSpec((tm, D), lambda i, e: (i, 0)),
        scratch_shapes=[pltpu.VMEM((tm, D), BF16), pltpu.VMEM((tm, D), F32)],
        compiler_params=pltpu.CompilerParams(
            dimension_semantics=("parallel", "arbitrary"),
            vmem_limit_bytes=VMEM_LIMIT),
    )(xp, g.reshape(1, D).astype(F32), b.reshape(1, D).astype(F32), gp,
      w1.astype(BF16), b1.astype(F32), w2.astype(BF16), b2.astype(F32))
    return out[:M]


# --------------------------------------------------------------------------
# multi-head attention (all heads inside one kernel, lane-dense [T, D] output,
# per-head contexts stored directly into o_ref slices, exact softmax)
# --------------------------------------------------------------------------

def _mha_core(q, k, v, mask, o_ref, scale, num_heads, want_probs):
    Tq, D = q.shape
    Tk = k.shape[0]
    Dh = D // num_heads
    qs = (q.astype(jnp.float32) * scale).astype(BF16)   # scale folded once
    psum = jnp.zeros((Tq, Tk), jnp.float32) if want_probs else None
    for h in range(num_heads):
        qh = qs[:, h * Dh:(h + 1) * Dh]
        kh = k[:, h * Dh:(h + 1) * Dh]
        vh = v[:, h * Dh:(h + 1) * Dh]
        s = lax.dot_general(qh, kh, (((1,), (1,)), ((), ())),
                            preferred_element_type=jnp.float32)
        if mask is not None:
            s = s + mask
        s = s - jnp.max(s, axis=-1, keepdims=True)
        e = jnp.exp(s)
        p = e / jnp.sum(e, axis=-1, keepdims=True)       # exact normalization
        ctx_h = jnp.dot(p.astype(BF16), vh, preferred_element_type=jnp.float32)
        o_ref[0, :, h * Dh:(h + 1) * Dh] = ctx_h.astype(o_ref.dtype)
        if want_probs:
            psum = psum + p
    return psum


def _mha_kernel_mask_probs(q_ref, k_ref, v_ref, m_ref, o_ref, p_ref, *,
                           scale, num_heads):
    psum = _mha_core(q_ref[0], k_ref[0], v_ref[0],
                     m_ref[...].astype(jnp.float32), o_ref,
                     scale, num_heads, True)
    p_ref[0] = (psum * (1.0 / num_heads)).astype(p_ref.dtype)


def _mha_kernel_nomask_probs(q_ref, k_ref, v_ref, o_ref, p_ref, *,
                             scale, num_heads):
    psum = _mha_core(q_ref[0], k_ref[0], v_ref[0], None, o_ref,
                     scale, num_heads, True)
    p_ref[0] = (psum * (1.0 / num_heads)).astype(p_ref.dtype)


def _mha_kernel_nomask_noprobs(q_ref, k_ref, v_ref, o_ref, *,
                               scale, num_heads):
    _mha_core(q_ref[0], k_ref[0], v_ref[0], None, o_ref,
              scale, num_heads, False)


def multi_head_attention_core(q, k, v, mask, num_heads, return_probs):
    """q:[B,Tq,D], k/v:[B,Tk,D], mask additive [Tq,Tk] (or None)."""
    B, Tq, D = q.shape
    Tk = k.shape[1]
    scale = 1.0 / math.sqrt(D // num_heads)

    in_specs = [pl.BlockSpec((1, Tq, D), lambda i: (i, 0, 0)),
                pl.BlockSpec((1, Tk, D), lambda i: (i, 0, 0)),
                pl.BlockSpec((1, Tk, D), lambda i: (i, 0, 0))]
    args = [q.astype(BF16), k.astype(BF16), v.astype(BF16)]
    if mask is not None:
        in_specs.append(pl.BlockSpec((Tq, Tk), lambda i: (0, 0)))
        args.append(mask.astype(F32))

    params = pltpu.CompilerParams(dimension_semantics=("parallel",))

    if return_probs:
        kernel = _mha_kernel_mask_probs if mask is not None \
            else _mha_kernel_nomask_probs
        ctx, probs = pl.pallas_call(
            functools.partial(kernel, scale=scale, num_heads=num_heads),
            grid=(B,),
            out_shape=(jax.ShapeDtypeStruct((B, Tq, D), BF16),
                       jax.ShapeDtypeStruct((B, Tq, Tk), F32)),
            in_specs=in_specs,
            out_specs=(pl.BlockSpec((1, Tq, D), lambda i: (i, 0, 0)),
                       pl.BlockSpec((1, Tq, Tk), lambda i: (i, 0, 0))),
            compiler_params=params,
        )(*args)
        return ctx, probs

    kernel = _mha_kernel_nomask_noprobs
    ctx = pl.pallas_call(
        functools.partial(kernel, scale=scale, num_heads=num_heads),
        grid=(B,),
        out_shape=jax.ShapeDtypeStruct((B, Tq, D), BF16),
        in_specs=in_specs,
        out_specs=pl.BlockSpec((1, Tq, D), lambda i: (i, 0, 0)),
        compiler_params=params,
    )(*args)
    return ctx, None


# --------------------------------------------------------------------------
# fused final-LN -> vocab projection -> cross-entropy, vocab axis tiled
# (streaming logsumexp + target gather in VMEM scratch, per-token losses out)
# --------------------------------------------------------------------------

def _ln_logits_ce_kernel(x_ref, g_ref, bg_ref, w_ref, b_ref, tgt_ref,
                         logits_ref, tl_ref,
                         xn_scr, m_scr, s_scr, t_scr, *, tv):
    j = pl.program_id(1)

    @pl.when(j == 0)
    def _():
        xn_scr[...] = _ln(x_ref[...].astype(jnp.float32),
                          g_ref[...], bg_ref[...]).astype(BF16)
        m_scr[...] = jnp.full_like(m_scr, -1e30)
        s_scr[...] = jnp.zeros_like(s_scr)
        t_scr[...] = jnp.zeros_like(t_scr)

    lg = jnp.dot(xn_scr[...], w_ref[...],
                 preferred_element_type=jnp.float32) + b_ref[...]
    logits_ref[...] = lg.astype(logits_ref.dtype)

    m_old = m_scr[...]
    m_new = jnp.maximum(m_old, jnp.max(lg, axis=-1, keepdims=True))
    s_scr[...] = (s_scr[...] * jnp.exp(m_old - m_new)
                  + jnp.sum(jnp.exp(lg - m_new), axis=-1, keepdims=True))
    m_scr[...] = m_new

    ids = lax.broadcasted_iota(jnp.int32, lg.shape, 1) + j * tv
    t_scr[...] += jnp.sum(jnp.where(ids == tgt_ref[...], lg, 0.0),
                          axis=-1, keepdims=True)

    @pl.when(j == pl.num_programs(1) - 1)
    def _():
        lse = m_scr[...] + jnp.log(s_scr[...])
        tl_ref[...] = lse - t_scr[...]


def fused_ln_logits_ce(x, g, b_ln, w, b, targets, mask, tm=256, tv=512):
    M, D = x.shape
    V = w.shape[1]
    tm, tv = min(tm, M), min(tv, V)
    xp = _pad_axis(x.astype(F32), 0, tm)
    tgt = _pad_axis(targets.reshape(M, 1).astype(jnp.int32), 0, tm)
    wp = _pad_axis(w.astype(BF16), 1, tv)
    vpad = (-V) % tv
    bp = b.reshape(1, V).astype(F32)
    if vpad:
        # padded vocab columns get a -1e30 bias so they vanish from the LSE
        bp = jnp.pad(bp, ((0, 0), (0, vpad)), constant_values=-1e30)
    Mp = xp.shape[0]
    Vp = wp.shape[1]

    logits, tok_loss = pl.pallas_call(
        functools.partial(_ln_logits_ce_kernel, tv=tv),
        grid=(Mp // tm, Vp // tv),
        out_shape=(jax.ShapeDtypeStruct((Mp, Vp), F32),
                   jax.ShapeDtypeStruct((Mp, 1), F32)),
        in_specs=[pl.BlockSpec((tm, D), lambda i, j: (i, 0)),
                  pl.BlockSpec((1, D), lambda i, j: (0, 0)),
                  pl.BlockSpec((1, D), lambda i, j: (0, 0)),
                  pl.BlockSpec((D, tv), lambda i, j: (0, j)),
                  pl.BlockSpec((1, tv), lambda i, j: (0, j)),
                  pl.BlockSpec((tm, 1), lambda i, j: (i, 0))],
        out_specs=(pl.BlockSpec((tm, tv), lambda i, j: (i, j)),
                   pl.BlockSpec((tm, 1), lambda i, j: (i, 0))),
        scratch_shapes=[pltpu.VMEM((tm, D), BF16),
                        pltpu.VMEM((tm, 1), F32),
                        pltpu.VMEM((tm, 1), F32),
                        pltpu.VMEM((tm, 1), F32)],
        compiler_params=pltpu.CompilerParams(
            dimension_semantics=("parallel", "arbitrary"),
            vmem_limit_bytes=VMEM_LIMIT),
    )(xp, g.reshape(1, D).astype(F32), b_ln.reshape(1, D).astype(F32),
      wp, bp, tgt)

    tok = tok_loss[:M, 0] * mask
    loss = jnp.sum(tok) / jnp.maximum(jnp.sum(mask), 1.0)
    return logits[:M, :V], loss


# --------------------------------------------------------------------------
# router z-loss / load-balance loss (tiny reductions -> plain XLA)
# --------------------------------------------------------------------------

def router_losses(router_logits_list, router_probs_list):
    z_total = jnp.float32(0.0)
    b_total = jnp.float32(0.0)
    for lg in router_logits_list:
        lg = lg.astype(F32)
        p = jax.nn.softmax(lg, axis=-1)
        lse = jax.nn.logsumexp(lg, axis=-1, keepdims=True)
        z_total = z_total + jnp.mean(jnp.sum(p * (lg - lse), axis=-1))
    for p in router_probs_list:
        p = p.astype(F32)
        load = jnp.sum(p, axis=0)
        expected = jnp.float32(p.shape[0]) / jnp.float32(p.shape[1])
        b_total = b_total + jnp.mean(jnp.abs(load - expected))
    nz = max(len(router_logits_list), 1)
    nb = max(len(router_probs_list), 1)
    return z_total / nz, b_total / nb


# --------------------------------------------------------------------------
# model blocks (glue)
# --------------------------------------------------------------------------

def self_attention_block(x, p, ln_g, ln_b, attn_mask, num_heads, return_probs):
    """Fused pre-LN -> packed QKV -> attention -> out-proj + residual."""
    B, T, D = x.shape
    xf = x.reshape(B * T, D)
    qkv = ln_linear(xf, ln_g, ln_b, p['w_qkv'], p['b_qkv'],
                    out_dtype=BF16)                               # [B*T, 3D]
    q = qkv[:, :D].reshape(B, T, D)
    k = qkv[:, D:2 * D].reshape(B, T, D)
    v = qkv[:, 2 * D:].reshape(B, T, D)
    ctx, probs = multi_head_attention_core(q, k, v, attn_mask, num_heads,
                                           return_probs)
    out = linear(ctx.reshape(B * T, D), p['wo'], p['bo'],
                 residual=xf, out_dtype=F32).reshape(B, T, D)
    return out, probs


def cross_attention_block(tgt, memory, p, ln_g, ln_b, num_heads):
    B, T, D = tgt.shape
    Tm = memory.shape[1]
    tf = tgt.reshape(B * T, D)
    q = ln_linear(tf, ln_g, ln_b, p['wq'], p['bq'],
                  out_dtype=BF16).reshape(B, T, D)
    kv = linear(memory.reshape(B * Tm, D), p['w_kv'], p['b_kv'],
                out_dtype=BF16)                                   # [B*Tm, 2D]
    k = kv[:, :D].reshape(B, Tm, D)
    v = kv[:, D:].reshape(B, Tm, D)
    ctx, probs = multi_head_attention_core(q, k, v, None, num_heads, True)
    out = linear(ctx.reshape(B * T, D), p['wo'], p['bo'],
                 residual=tf, out_dtype=F32).reshape(B, T, D)
    return out, probs


def decoder_layer(tgt, memory, p, tgt_mask, num_heads):
    B, T, D = tgt.shape
    tgt, sa_w = self_attention_block(tgt, p['self_attn'], p['ln1_g'],
                                     p['ln1_b'], tgt_mask, num_heads, True)
    tgt, ca_w = cross_attention_block(tgt, memory, p['cross_attn'],
                                      p['ln2_g'], p['ln2_b'], num_heads)
    tgt = ln_ffn_residual(tgt.reshape(B * T, D), p['ln3_g'], p['ln3_b'],
                          p['ff_w1'], p['ff_b1'], p['ff_w2'],
                          p['ff_b2']).reshape(B, T, D)
    return tgt, {'self_attn_weights': sa_w, 'cross_attn_weights': ca_w}


def transformer_decoder(tgt, memory, p, num_heads):
    B, T, D = tgt.shape
    # generate_square_subsequent_mask: 0 on/below diag, -inf above (use -1e9,
    # applied in f32 before exp so it is numerically safe)
    causal = jnp.where(jnp.triu(jnp.ones((T, T), F32), k=1) == 1.0, -1e9, 0.0)
    out = tgt
    all_attn = {}
    for i, lp in enumerate(p['layers']):
        out, aw = decoder_layer(out, memory, lp, causal, num_heads)
        all_attn[f'layer_{i}'] = aw
    # final decoder LayerNorm is fused into the logits+CE kernel by the caller
    return out, {'attn_weights': all_attn}


def image_encoder_layer(x, p, num_heads, top_k):
    B, T, D = x.shape
    # attention sub-block (no mask, probs discarded -> never materialized)
    x, _ = self_attention_block(x, p['attn'], p['ln1_g'], p['ln1_b'],
                                None, num_heads, return_probs=False)
    xf = x.reshape(B * T, D)
    # router on LN(x) (LN fused into router matmul)
    router_logits = ln_linear(xf, p['ln2_g'], p['ln2_b'],
                              p['router_w'], p['router_b'],
                              out_dtype=F32)                      # [B*T, E]
    router_probs = jax.nn.softmax(router_logits, axis=-1)
    E = router_probs.shape[-1]
    topv, topi = lax.top_k(router_probs, top_k)
    gates = topv / jnp.sum(topv, axis=-1, keepdims=True)
    gate_full = jnp.sum(jax.nn.one_hot(topi, E, dtype=F32) * gates[..., None],
                        axis=1)                                   # [B*T, E]
    # fused LN -> experts (expert grid axis) -> gated sum -> + residual
    w1 = jnp.stack([e['w1'] for e in p['experts']])               # [E, D, H]
    b1 = jnp.stack([e['b1'].reshape(1, -1) for e in p['experts']])
    w2 = jnp.stack([e['w2'] for e in p['experts']])
    b2 = jnp.stack([e['b2'].reshape(1, -1) for e in p['experts']])
    x = ln_moe_residual(xf, p['ln2_g'], p['ln2_b'], gate_full,
                        w1, b1, w2, b2).reshape(B, T, D)
    return x, {'router_logits': router_logits, 'router_probs': router_probs}


def image_encoder(x, p, num_heads, top_k):
    B, T, D = x.shape
    layer_outputs = {}
    for i, lp in enumerate(p['layers']):
        x, lo = image_encoder_layer(x, lp, num_heads, top_k)
        layer_outputs[f'layer_{i}'] = lo
    # memory is only ever consumed as a bf16 MXU input (cross-attn KV proj)
    x = layer_norm(x.reshape(-1, D), p['norm_g'], p['norm_b'],
                   out_dtype=BF16).reshape(B, T, D)
    return {'output': x, 'layer_outputs': layer_outputs}


def patch_embed(images, w, b, patch_size):
    """Conv2d(C, D, kernel=stride=P) as a tiled Pallas matmul over patches."""
    B, C, H, W = images.shape
    P = patch_size
    nh, nw = H // P, W // P
    patches = images.reshape(B, C, nh, P, nw, P)
    patches = patches.transpose(0, 2, 4, 1, 3, 5).reshape(B * nh * nw,
                                                          C * P * P)
    tokens = linear(patches, w, b, out_dtype=F32)
    return tokens.reshape(B, nh * nw, -1)


# --------------------------------------------------------------------------
# full forward pass of ImageCaptioningMoE
# --------------------------------------------------------------------------

def image_captioning_moe_forward(params, cfg, images, text_tokens,
                                 attention_mask=None):
    # TODO(synk): tgt_key_padding_mask path not implemented (forward is
    # exercised with attention_mask=None, the default code path).
    B = images.shape[0]
    D = cfg['embed_dim']

    # ---- encode image ----
    img_tokens = patch_embed(images, params['patch_w'], params['patch_b'],
                             cfg['patch_size'])
    img_tokens = img_tokens + params['img_pos_embed']            # dropout = id
    img_enc = image_encoder(img_tokens, params['image_encoder'],
                            cfg['num_heads'], cfg['top_k'])
    img_features = img_enc['output']

    # ---- decoder input / target ----
    dec_in = text_tokens[:, :-1]
    dec_tgt = text_tokens[:, 1:]
    T = dec_in.shape[1]
    emb = jnp.take(params['text_embedding'], dec_in, axis=0)     # [B, T, D]
    L = min(T, cfg['max_seq_len'])
    emb = emb.at[:, :L].add(params['text_pos_embed'][:, :L])     # dropout = id

    dec_out, dec_attn = transformer_decoder(emb, img_features,
                                            params['decoder'],
                                            cfg['num_heads'])

    # ---- fused final-LN + vocab projection + masked cross-entropy ----
    loss_mask = (dec_tgt != cfg['pad_token_id']).astype(F32)
    logits_flat, loss = fused_ln_logits_ce(
        dec_out.reshape(B * T, D),
        params['decoder']['norm_g'], params['decoder']['norm_b'],
        params['out_w'], params['out_b'],
        dec_tgt.reshape(B * T), loss_mask.reshape(B * T))
    logits = logits_flat.reshape(B, T, cfg['vocab_size'])

    # ---- router z / load-balance losses (tiny -> plain XLA, exact formulas) --
    nL = cfg['img_encoder_layers']
    rl = [img_enc['layer_outputs'][f'layer_{i}']['router_logits']
          for i in range(nL)]
    rp = [img_enc['layer_outputs'][f'layer_{i}']['router_probs']
          for i in range(nL)]
    router_z_loss, router_balance_loss = router_losses(rl, rp)
    router_loss = 1e-4 * router_z_loss + 1e-3 * router_balance_loss
    total_loss = loss + router_loss

    return {'logits': logits, 'loss': loss,
            'router_z_loss': router_z_loss,
            'router_balance_loss': router_balance_loss,
            'router_loss': router_loss,
            'total_loss': total_loss,
            'decoder_attentions': dec_attn}


# --------------------------------------------------------------------------
# deterministic parameter init (normal std=0.02 weights, as _init_weights)
# --------------------------------------------------------------------------

def init_params(key, cfg):
    keys = iter(jax.random.split(key, 256))

    def nrm(shape, std=0.02):
        return (std * jax.random.normal(next(keys), shape)).astype(F32)

    def zeros(shape):
        return jnp.zeros(shape, F32)

    def ones(shape):
        return jnp.ones(shape, F32)

    D = cfg['embed_dim']
    E = cfg['num_general_experts']
    V = cfg['vocab_size']
    P = cfg['patch_size']
    C = cfg['in_channels']
    nP = (cfg['img_size'] // P) ** 2

    def self_mha_p():
        return {'w_qkv': nrm((D, 3 * D)), 'b_qkv': zeros((3 * D,)),
                'wo': nrm((D, D)), 'bo': zeros((D,))}

    def cross_mha_p():
        return {'wq': nrm((D, D)), 'bq': zeros((D,)),
                'w_kv': nrm((D, 2 * D)), 'b_kv': zeros((2 * D,)),
                'wo': nrm((D, D)), 'bo': zeros((D,))}

    def expert_p():
        H = 4 * D
        return {'w1': nrm((D, H)), 'b1': zeros((H,)),
                'w2': nrm((H, D)), 'b2': zeros((D,))}

    params = {
        'patch_w': nrm((C * P * P, D)), 'patch_b': zeros((D,)),
        'img_pos_embed': nrm((1, nP, D)),
        'text_pos_embed': nrm((1, cfg['max_seq_len'], D)),
        'text_embedding': nrm((V, D)),
        'image_encoder': {
            'layers': [{
                'ln1_g': ones((D,)), 'ln1_b': zeros((D,)),
                'attn': self_mha_p(),
                'ln2_g': ones((D,)), 'ln2_b': zeros((D,)),
                'router_w': nrm((D, E)), 'router_b': zeros((E,)),
                'experts': [expert_p() for _ in range(E)],
            } for _ in range(cfg['img_encoder_layers'])],
            'norm_g': ones((D,)), 'norm_b': zeros((D,)),
        },
        'decoder': {
            'layers': [{
                'ln1_g': ones((D,)), 'ln1_b': zeros((D,)),
                'ln2_g': ones((D,)), 'ln2_b': zeros((D,)),
                'ln3_g': ones((D,)), 'ln3_b': zeros((D,)),
                'self_attn': self_mha_p(),
                'cross_attn': cross_mha_p(),
                'ff_w1': nrm((D, 4 * D)), 'ff_b1': zeros((4 * D,)),
                'ff_w2': nrm((4 * D, D)), 'ff_b2': zeros((D,)),
            } for _ in range(cfg['decoder_layers'])],
            'norm_g': ones((D,)), 'norm_b': zeros((D,)),
        },
        'out_w': nrm((D, V)), 'out_b': zeros((V,)),
    }
    return params


# --------------------------------------------------------------------------

if __name__ == "__main__":
    cfg = dict(img_size=16, patch_size=4, in_channels=3, embed_dim=32,
               vocab_size=64, max_seq_len=16, num_general_experts=4, top_k=2,
               num_heads=4, img_encoder_layers=2, decoder_layers=2,
               pad_token_id=0)

    key = jax.random.PRNGKey(0)
    kp, ki, kt = jax.random.split(key, 3)
    params = init_params(kp, cfg)

    B, S = 2, 8
    images = jax.random.normal(
        ki, (B, cfg['in_channels'], cfg['img_size'], cfg['img_size']), F32)
    text_tokens = jax.random.randint(kt, (B, S), 0, cfg['vocab_size'],
                                     dtype=jnp.int32)

    out = image_captioning_moe_forward(params, cfg, images, text_tokens)
    out = jax.block_until_ready(out)

    total = float(out['total_loss'])
    if math.isnan(total) or math.isinf(total):
        raise ValueError("detected invalid loss value")
    assert out['logits'].shape == (B, S - 1, cfg['vocab_size'])
    print("KERNEL_OK")
</pallas_src>

<mosaic_0001>
module attributes {stable_mosaic.version = 11 : i64} {
  func.func @_matmul_kernel(%arg0: i32, %arg1: i32, %arg2: i32, %arg3: memref<32x48xbf16, #tpu.memory_space<vmem>>, %arg4: memref<48x32xbf16, #tpu.memory_space<vmem>>, %arg5: memref<1x32xf32, #tpu.memory_space<vmem>>, %arg6: memref<32x32xf32, #tpu.memory_space<vmem>>, %arg7: memref<32x32xf32, #tpu.memory_space<vmem>>) attributes {dimension_semantics = [#tpu.dimension_semantics<parallel>, #tpu.dimension_semantics<parallel>, #tpu.dimension_semantics<arbitrary>], iteration_bounds = array<i64: 1, 1, 1>, scalar_prefetch = 0 : i64, scratch_operands = 1 : i64, tpu.core_type = #tpu.core_type<tc>, window_params = [{transform_indices = @transform_0, window_bounds = array<i64: 32, 48>}, {transform_indices = @transform_1, window_bounds = array<i64: 48, 32>}, {transform_indices = @transform_2, window_bounds = array<i64: 1, 32>}, {transform_indices = @transform_3, window_bounds = array<i64: 32, 32>}]} {
    %c0_i32 = arith.constant 0 : i32
    %0 = arith.cmpi eq, %arg2, %c0_i32 : i32
    %1 = arith.extui %0 : i1 to i32
    %c0_i32_0 = arith.constant 0 : i32
    %2 = arith.cmpi ne, %1, %c0_i32_0 : i32
    scf.if %2 {
      %cst_10 = arith.constant 0.000000e+00 : f32
      %12 = vector.broadcast %cst_10 : f32 to vector<32x32xf32>
      %c0_11 = arith.constant 0 : index
      %c0_12 = arith.constant 0 : index
      %13 = vector.load %arg7[%c0_11, %c0_12] : memref<32x32xf32, #tpu.memory_space<vmem>>, vector<32x32xf32>
      tpu.vector_store %arg7[%c0_11, %c0_12], %12 {strides = array<i32>} : memref<32x32xf32, #tpu.memory_space<vmem>>, vector<32x32xf32>,
    } else {
    }
    %c0 = arith.constant 0 : index
    %c0_1 = arith.constant 0 : index
    %3 = vector.load %arg7[%c0, %c0_1] : memref<32x32xf32, #tpu.memory_space<vmem>>, vector<32x32xf32>
    %c0_2 = arith.constant 0 : index
    %c0_3 = arith.constant 0 : index
    %4 = vector.load %arg3[%c0_2, %c0_3] : memref<32x48xbf16, #tpu.memory_space<vmem>>, vector<32x48xbf16>
    %c0_4 = arith.constant 0 : index
    %c0_5 = arith.constant 0 : index
    %5 = vector.load %arg4[%c0_4, %c0_5] : memref<48x32xbf16, #tpu.memory_space<vmem>>, vector<48x32xbf16>
    %cst = arith.constant dense<0.000000e+00> : vector<32x32xf32>
    %6 = tpu.matmul %4, %5, %cst {dimension_numbers = #tpu.dot_dimension_numbers<[1], [0], [0], [1], [0, 0, 1, 1], [], []>} : vector<32x48xbf16>, vector<48x32xbf16>, vector<32x32xf32> -> vector<32x32xf32>
    %7 = arith.addf %3, %6 : vector<32x32xf32>
    %c0_6 = arith.constant 0 : index
    %c0_7 = arith.constant 0 : index
    %8 = vector.load %arg7[%c0_6, %c0_7] : memref<32x32xf32, #tpu.memory_space<vmem>>, vector<32x32xf32>
    tpu.vector_store %arg7[%c0_6, %c0_7], %7 {strides = array<i32>} : memref<32x32xf32, #tpu.memory_space<vmem>>, vector<32x32xf32>,
    %c0_i32_8 = arith.constant 0 : i32
    %9 = arith.cmpi eq, %arg2, %c0_i32_8 : i32
    %10 = arith.extui %9 : i1 to i32
    %c0_i32_9 = arith.constant 0 : i32
    %11 = arith.cmpi ne, %10, %c0_i32_9 : i32
    scf.if %11 {
      %c0_10 = arith.constant 0 : index
      %c0_11 = arith.constant 0 : index
      %12 = vector.load %arg7[%c0_10, %c0_11] : memref<32x32xf32, #tpu.memory_space<vmem>>, vector<32x32xf32>
      %c0_12 = arith.constant 0 : index
      %c0_13 = arith.constant 0 : index
      %13 = vector.load %arg5[%c0_12, %c0_13] : memref<1x32xf32, #tpu.memory_space<vmem>>, vector<1x32xf32>
      %14 = vector.broadcast %13 : vector<1x32xf32> to vector<32x32xf32>
      %15 = arith.addf %12, %14 : vector<32x32xf32>
      %c0_14 = arith.constant 0 : index
      %c0_15 = arith.constant 0 : index
      %16 = vector.load %arg6[%c0_14, %c0_15] : memref<32x32xf32, #tpu.memory_space<vmem>>, vector<32x32xf32>
      tpu.vector_store %arg6[%c0_14, %c0_15], %15 {strides = array<i32>} : memref<32x32xf32, #tpu.memory_space<vmem>>, vector<32x32xf32>,
    } else {
    }
    return
  }
  func.func @transform_0(%arg0: i32, %arg1: i32, %arg2: i32) -> (i32, i32) {
    %c0_i32 = arith.constant 0 : i32
    return %arg0, %arg2 : i32, i32
  }
  func.func @transform_1(%arg0: i32, %arg1: i32, %arg2: i32) -> (i32, i32) {
    %c0_i32 = arith.constant 0 : i32
    return %arg2, %arg1 : i32, i32
  }
  func.func @transform_2(%arg0: i32, %arg1: i32, %arg2: i32) -> (i32, i32) {
    %c0_i32 = arith.constant 0 : i32
    %c0_i32_0 = arith.constant 0 : i32
    return %c0_i32, %arg1 : i32, i32
  }
  func.func @transform_3(%arg0: i32, %arg1: i32, %arg2: i32) -> (i32, i32) {
    %c0_i32 = arith.constant 0 : i32
    return %arg0, %arg1 : i32, i32
  }
}

</mosaic_0001>

<llo_original>
// kernel: tpu_custom_call.1
$region0: #{tpu_custom_call.1}
  #allocation0 [shape = 'u32[]', space=smem, size = 0x4, offset = 0x4, fixed_abs, tag = 'smem constant byte address 0x4 - core index']
  #allocation1 [shape = 'u32[72,128]{1,0:T(1,128)}', space=vmem, size = 0x9000, scoped, tag = 'internal scratch']
  #allocation2 [shape = 'f32[32,32]{1,0:T(8,128)}', space=vmem, size = 0x4000, scoped, tag = 'scratch operand']
  %s0 = inlined_call_operand.vmem [shape: bf16[32,48], index: 0, kind: input, shape index: {}]
  %s1 = inlined_call_operand.vmem [shape: bf16[48,32], index: 1, kind: input, shape index: {}]
  %s2 = inlined_call_operand.vmem [shape: f32[1,32], index: 2, kind: input, shape index: {}]
  %s3 = inlined_call_operand.hbm [shape: f32[32,32], index: 3, kind: output, shape index: {}]
  %s4 = sld [smem:[#allocation0]]
  $region30: #{tpu_custom_call.1} parent=0
    _
  %s6 = ssub.s32 1, %s4
  %s7 = scalar_select 0, %s6, %s4
  $region1: #{tpu_custom_call.1} parent=0
    #allocation3 [shape = 'u8[16384]{0}', space=vmem, size = 0x4000, scoped, tag = 'output window, operand 0, single buffered']
    #allocation4 [shape = 's32[1]{0}', space=sflag, size = 0x4, scoped, tag = 'scoped memory for tpu_custom_call.1']
    %8 = vsyncpa [#allocation4], 0
    // Predicated region
    $region2: #{tpu_custom_call.1} parent=1 // pred_check
      _
    $region3: #{tpu_custom_call.1} parent=1 // pred_check_branch
      %10 = sbr.rel (0) target = $region5
    $region4: #{tpu_custom_call.1} parent=1 // pred_region
      _
    $region5: #{tpu_custom_call.1} parent=1 // pred_fallthru
      _
    // Predicated region
    $region6: #{tpu_custom_call.1} parent=1 // pred_check
      _
    $region7: #{tpu_custom_call.1} parent=1 // pred_check_branch
      %12 = sbr.rel (0) target = $region9
    $region8: #{tpu_custom_call.1} parent=1 // pred_region
      _
    $region9: #{tpu_custom_call.1} parent=1 // pred_fallthru
      _
    // Predicated region
    $region10: #{tpu_custom_call.1} parent=1 // pred_check
      _
    $region11: #{tpu_custom_call.1} parent=1 // pred_check_branch
      %14 = sbr.rel (0) target = $region13
    $region12: #{tpu_custom_call.1} parent=1 // pred_region
      _
    $region13: #{tpu_custom_call.1} parent=1 // pred_fallthru
      _
    %p16 = scmp.eq.s32.totalorder 0, 0
    // Predicated region
    $region14: #{tpu_custom_call.1} parent=1 // pred_check
      %p17 = pneg %p16
    $region15: #{tpu_custom_call.1} parent=1 // pred_check_branch
      %19 = sbr.rel (%p17) target = $region17
    $region16: #{tpu_custom_call.1} parent=1 // pred_region
      %vm20 = vcmask 261120
      %21 = vst.msk [vmem:[#allocation2] sm:$0xff] %vm20, 0.0
      %22 = vst.msk [vmem:[#allocation2 + $0x8] sm:$0xff] %vm20, 0.0
      %23 = vst.msk [vmem:[#allocation2 + $0x10] sm:$0xff] %vm20, 0.0
      %24 = vst.msk [vmem:[#allocation2 + $0x18] sm:$0xff] %vm20, 0.0
    $region17: #{tpu_custom_call.1} parent=1 // pred_fallthru
      _
    %v25 = vld [vmem:[#allocation2] sm:$0xff]
    %v26 = vld [vmem:[#allocation2 + $0x8] sm:$0xff]
    %v27 = vld [vmem:[#allocation2 + $0x10] sm:$0xff]
    %v28 = vld [vmem:[#allocation2 + $0x18] sm:$0xff]
    %v29 = vld [vmem:[%s0] sm:$0xf]
    %v30 = vld [vmem:[%s0 + $0x4] sm:$0xf]
    %v31 = vld [vmem:[%s0 + $0x8] sm:$0xf]
    %v32 = vld [vmem:[%s0 + $0xc] sm:$0xf]
    %v33 = vld [vmem:[%s1] sm:$0xf]
    %v34 = vld [vmem:[%s1 + $0x4] sm:$0xf]
    %v35 = vld [vmem:[%s1 + $0x8] sm:$0xf]
    %v36 = vld [vmem:[%s1 + $0xc] sm:$0xf]
    %v37 = vld [vmem:[%s1 + $0x10] sm:$0xf]
    %v38 = vld [vmem:[%s1 + $0x14] sm:$0xf]
    %v43 = vunpack.c.l.b16 %v29
    %v44 = vunpack.c.l.b16 %v30
    %v45 = vunpack.c.l.b16 %v31
    %v46 = vunpack.c.l.b16 %v32
    %v47 = vpack.c.b16 %v44, %v43
    %v48 = vpack.c.b16 %v46, %v45
    %v55 = vunpack.c.l.b16 %v33
    %v56 = vunpack.c.l.b16 %v34
    %v57 = vunpack.c.l.b16 %v35
    %v58 = vunpack.c.l.b16 %v36
    %v59 = vunpack.c.l.b16 %v37
    %v60 = vunpack.c.l.b16 %v38
    %v61 = vpack.c.b16 %v56, %v55
    %v62 = vpack.c.b16 %v58, %v57
    %v63 = vpack.c.b16 %v60, %v59
    %vm67 = vcmask 392192
    %v69 = vsel %vm67, %v47, 0
    %v72 = vsel %vm67, %v48, 0
    %74 = vmatpush.bf16.msra.mxu0 0
    %75 = vmatpush.bf16.msra.mxu0 0
    %76 = vmatpush.bf16.msra.mxu0 0
    %77 = vmatpush.bf16.msra.mxu0 0
    %78 = vmatpush.bf16.msra.mxu0 0
    %79 = vmatpush.bf16.msra.mxu0 %v63
    %80 = vmatpush.bf16.msra.mxu0 %v62
    %81 = vmatpush.bf16.msra.mxu0 %v61
    %82 = vmatmul.bf16.gmra.mxu0 %v69
    %v83 = vpop.f32.mrf.mxu0
    %v84 = vadd.f32 0.0, %v83
    %v85 = vpop.f32.mrf.mxu0
    %v86 = vadd.f32 0.0, %v85
    %87 = vmatmul.bf16.gmra.mxu0 %v72
    %v88 = vpop.f32.mrf.mxu0
    %v89 = vadd.f32 0.0, %v88
    %v90 = vpop.f32.mrf.mxu0
    %v91 = vadd.f32 0.0, %v90
    %92 = vdwg.mxu0
    %v93 = vadd.f32 %v25, %v84
    %v94 = vadd.f32 %v26, %v86
    %v95 = vadd.f32 %v27, %v89
    %v96 = vadd.f32 %v28, %v91
    %vm97 = vcmask 261120
    %98 = vst.msk [vmem:[#allocation2] sm:$0xff] %vm97, %v93
    %99 = vst.msk [vmem:[#allocation2 + $0x8] sm:$0xff] %vm97, %v94
    %100 = vst.msk [vmem:[#allocation2 + $0x10] sm:$0xff] %vm97, %v95
    %101 = vst.msk [vmem:[#allocation2 + $0x18] sm:$0xff] %vm97, %v96
    // Predicated region
    $region18: #{tpu_custom_call.1} parent=1 // pred_check
      %p102 = pneg %p16
    $region19: #{tpu_custom_call.1} parent=1 // pred_check_branch
      %104 = sbr.rel (%p102) target = $region21
    $region20: #{tpu_custom_call.1} parent=1 // pred_region
      %v105 = vld [vmem:[#allocation2] sm:$0xff]
      %v106 = vld [vmem:[#allocation2 + $0x8] sm:$0xff]
      %v107 = vld [vmem:[#allocation2 + $0x10] sm:$0xff]
      %v108 = vld [vmem:[#allocation2 + $0x18] sm:$0xff]
      %v109 = vld [vmem:[%s2] sm:$0x1]
      %v111 = vperm.slane %v109, 0
      %v113 = vadd.f32 %v105, %v111
      %v114 = vadd.f32 %v106, %v111
      %v115 = vadd.f32 %v107, %v111
      %v116 = vadd.f32 %v108, %v111
      %117 = vst.msk [vmem:[#allocation3] sm:$0xff] %vm97, %v113
      %118 = vst.msk [vmem:[#allocation3 + $0x8] sm:$0xff] %vm97, %v114
      %119 = vst.msk [vmem:[#allocation3 + $0x10] sm:$0xff] %vm97, %v115
      %120 = vst.msk [vmem:[#allocation3 + $0x18] sm:$0xff] %vm97, %v116
    $region21: #{tpu_custom_call.1} parent=1 // pred_fallthru
      _
    // Predicated region
    $region22: #{tpu_custom_call.1} parent=1 // pred_check
      _
    $region23: #{tpu_custom_call.1} parent=1 // pred_check_branch
      %122 = sbr.rel (0) target = $region25
    $region24: #{tpu_custom_call.1} parent=1 // pred_region
      %124 = vsyncadd [#allocation4], 0
      %s125 = sshll.u32 [#allocation3], 4
      %s126 = int_to_ptr.vmem [resolvable:$true] %s125
      %s127 = sshll.u32 %s3, 4
      %s128 = int_to_ptr.hbm [resolvable:$true] %s127
      %133 = dma.vmem_to_hbm [thread:$0]  %s126, 512, %s128, [#allocation4], 128, 128, 8
    $region25: #{tpu_custom_call.1} parent=1 // pred_fallthru
      _
    // Predicated region
    $region26: #{tpu_custom_call.1} parent=1 // pred_check
      _
    $region27: #{tpu_custom_call.1} parent=1 // pred_check_branch
      %135 = sbr.rel (0) target = $region29
    $region28: #{tpu_custom_call.1} parent=1 // pred_region
      %137 = dma.done [#allocation4], 512
    $region29: #{tpu_custom_call.1} parent=1 // pred_fallthru
      _
    %138 = vsyncpa [#allocation4], 1

</llo_original>
